<compile_context>
chip_gen: v5e
topology: v5e:2x2
jax: 0.10.0
libtpu: 0.0.40
codegen_flags: <defaults>
</compile_context>

<pallas_src>
import functools

import jax
import jax.numpy as jnp
from jax import lax
from jax.experimental import pallas as pl
from jax.experimental.pallas import tpu as pltpu

# Scoped-VMEM budget: explicitly below v7x's 64 MiB physical VMEM and above
# v5e's 16 MiB scoped default, so the same tile caps work on v5e/v6e/v7x.
_VMEM_LIMIT_BYTES = 48 * 1024 * 1024


# --------------------------------------------------------------- utilities --
def _pick_tile(n: int, cap: int, mult: int, *, min_blocks: int = 1) -> int:
    """Largest t <= cap with n % t == 0 and t % mult == 0.  With min_blocks=2
    the tile is additionally capped at n//2 so a 'parallel' grid axis has at
    least two steps and v7x's second TensorCore gets work.  Falls back to n
    (a block equal to the full dimension is always legal)."""
    lim = min(cap, n)
    if min_blocks > 1 and n >= min_blocks * mult:
        lim = min(lim, n // min_blocks)
    best = None
    t = mult
    while t <= lim:
        if n % t == 0:
            best = t
        t += mult
    return best if best is not None else n


def _dropout_mask(key, shape, rate: float):
    """Pre-scaled keep mask with PyTorch F.dropout semantics (zero with prob
    `rate`, else scale by 1/(1-rate)).
    TODO(synk): on hardware this could be generated in-kernel with
    pltpu.prng_seed / prng_random_bits (removes the HBM mask read); kept as a
    jax.random array for portability (interpret mode lacks the HW PRNG)."""
    keep = jax.random.bernoulli(key, 1.0 - rate, shape)
    return keep.astype(jnp.float32) * (1.0 / (1.0 - rate))


# ------------------------- GraphConvolution feature matmul: dropout(x) @ W ---
def _feat_kernel(*refs, n_masks, split):
    x_ref = refs[0]
    mask_refs = refs[1:1 + n_masks]
    w_ref = refs[1 + n_masks]
    o_ref = refs[2 + n_masks]
    x = x_ref[...]
    if n_masks <= 1:
        if n_masks == 1:
            x = x * mask_refs[0][...]
        out = jnp.dot(x, w_ref[...], preferred_element_type=jnp.float32)
    else:
        # Fused gc2|gc3 with *independent* dropout masks (PyTorch semantics):
        # [dropout_2(x) @ W2 | dropout_3(x) @ W3].
        d = split
        out2 = jnp.dot(x * mask_refs[0][...], w_ref[:, :d],
                       preferred_element_type=jnp.float32)
        out3 = jnp.dot(x * mask_refs[1][...], w_ref[:, d:],
                       preferred_element_type=jnp.float32)
        out = jnp.concatenate([out2, out3], axis=1)
    o_ref[...] = out.astype(o_ref.dtype)


def feat_matmul(x, masks, w, *, out_dtype=jnp.bfloat16, split=None, tm_cap=512):
    """support = dropout(x) @ W.  `masks` is a list of 0, 1 or 2 pre-scaled
    dropout keep masks (2 => fused gc2|gc3 branches; `split` is the per-branch
    output width).  Output is bf16 so the following adjacency matmul reads it
    at half the HBM cost and native MXU rate (f32 accumulation kept)."""
    N, F = x.shape
    H = w.shape[1]
    tm = _pick_tile(N, tm_cap, 8, min_blocks=2)
    row_spec = pl.BlockSpec((tm, F), lambda i: (i, 0))
    # Weight block is constant across the grid -> stays resident in VMEM.
    # (pl.Buffered(1) single-buffering would halve its footprint on v7x; left
    #  at the default buffering for portability.)
    w_spec = pl.BlockSpec((F, H), lambda i: (0, 0))
    return pl.pallas_call(
        functools.partial(_feat_kernel, n_masks=len(masks), split=split),
        out_shape=jax.ShapeDtypeStruct((N, H), out_dtype),
        grid=(N // tm,),
        in_specs=[row_spec] + [row_spec] * len(masks) + [w_spec],
        out_specs=pl.BlockSpec((tm, H), lambda i: (i, 0)),
        compiler_params=pltpu.CompilerParams(
            dimension_semantics=("parallel",),
            vmem_limit_bytes=_VMEM_LIMIT_BYTES),
    )(x, *masks, w)


# ------------------------------ GraphConvolution aggregation: act(adj @ s) ---
def _adj_matmul_kernel(adj_ref, s_ref, o_ref, acc_ref, *, relu):
    k = pl.program_id(1)

    @pl.when(k == 0)
    def _():
        acc_ref[...] = jnp.zeros_like(acc_ref)

    acc_ref[...] += jnp.dot(adj_ref[...], s_ref[...],
                            preferred_element_type=jnp.float32)

    @pl.when(k == pl.num_programs(1) - 1)
    def _():
        out = acc_ref[...]
        if relu:
            out = jnp.maximum(out, 0.0)
        o_ref[...] = out.astype(o_ref.dtype)


def adj_matmul(adj, support, *, relu, out_dtype=jnp.float32,
               tm_cap=512, tk_cap=1024):
    # TODO(synk): torch.spmm uses a sparse adjacency; Pallas has no sparse
    # matmul primitive, so adj is consumed as a dense [N, N] (bf16) matrix.
    N = adj.shape[0]
    H = support.shape[1]
    tm = _pick_tile(N, tm_cap, 8, min_blocks=2)     # >=2 row tiles -> megacore
    tk = _pick_tile(N, tk_cap, 128)                 # K-tiling bounds VMEM per step
    return pl.pallas_call(
        functools.partial(_adj_matmul_kernel, relu=relu),
        out_shape=jax.ShapeDtypeStruct((N, H), out_dtype),
        grid=(N // tm, N // tk),
        in_specs=[pl.BlockSpec((tm, tk), lambda i, k: (i, k)),
                  pl.BlockSpec((tk, H), lambda i, k: (k, 0))],
        out_specs=pl.BlockSpec((tm, H), lambda i, k: (i, 0)),
        scratch_shapes=[pltpu.VMEM((tm, H), jnp.float32)],
        compiler_params=pltpu.CompilerParams(
            dimension_semantics=("parallel", "arbitrary"),
            vmem_limit_bytes=_VMEM_LIMIT_BYTES),
    )(adj, support)


# --- fused gc2|gc3 aggregation + reparameterize + decoder-dropout epilogue ---
def _adj_reparam_kernel(*refs, use_eps, use_mask, d):
    idx = 0
    adj_ref = refs[idx]; idx += 1
    s_ref = refs[idx]; idx += 1
    eps_ref = None
    mask_ref = None
    if use_eps:
        eps_ref = refs[idx]; idx += 1
    if use_mask:
        mask_ref = refs[idx]; idx += 1
    mu_ref, logvar_ref, z_ref, acc_ref = refs[idx:idx + 4]

    k = pl.program_id(1)

    @pl.when(k == 0)
    def _():
        acc_ref[...] = jnp.zeros_like(acc_ref)

    acc_ref[...] += jnp.dot(adj_ref[...], s_ref[...],
                            preferred_element_type=jnp.float32)

    @pl.when(k == pl.num_programs(1) - 1)
    def _():
        acc = acc_ref[...]               # [mu | logvar], shape (tm, 2*d)
        mu = acc[:, :d]
        logvar = acc[:, d:]
        mu_ref[...] = mu
        logvar_ref[...] = logvar
        z = mu
        if use_eps:                      # training: z = mu + eps * exp(logvar)
            z = z + eps_ref[...] * jnp.exp(logvar)
        if use_mask:                     # decoder dropout (pre-scaled keep mask)
            z = z * mask_ref[...]
        z_ref[...] = z


def adj_matmul_reparam(adj, support, eps, mask_z, *, d, tm_cap=512, tk_cap=1024):
    """One adjacency pass for the fused gc2|gc3 weights.  The epilogue emits
    mu, logvar AND z = dropout(mu + eps*exp(logvar)), so the decoder consumes a
    single (N, d) array instead of four."""
    N = adj.shape[0]
    H = support.shape[1]                 # == 2*d  ([mu | logvar])
    tm = _pick_tile(N, tm_cap, 8, min_blocks=2)
    tk = _pick_tile(N, tk_cap, 128)
    use_eps = eps is not None
    use_mask = mask_z is not None

    row_d = pl.BlockSpec((tm, d), lambda i, k: (i, 0))
    in_specs = [pl.BlockSpec((tm, tk), lambda i, k: (i, k)),
                pl.BlockSpec((tk, H), lambda i, k: (k, 0))]
    args = [adj, support]
    if use_eps:
        in_specs.append(row_d); args.append(eps)
    if use_mask:
        in_specs.append(row_d); args.append(mask_z)

    shp = jax.ShapeDtypeStruct((N, d), jnp.float32)
    return pl.pallas_call(
        functools.partial(_adj_reparam_kernel, use_eps=use_eps,
                          use_mask=use_mask, d=d),
        out_shape=(shp, shp, shp),       # mu, logvar, z
        grid=(N // tm, N // tk),
        in_specs=in_specs,
        out_specs=(row_d, row_d, row_d),
        scratch_shapes=[pltpu.VMEM((tm, H), jnp.float32)],
        compiler_params=pltpu.CompilerParams(
            dimension_semantics=("parallel", "arbitrary"),
            vmem_limit_bytes=_VMEM_LIMIT_BYTES),
    )(*args)


# --------------------------------- InnerProductDecoder: sigmoid(z @ z.T) -----
def _decoder_kernel(z_ref, o_ref, *, tm, tn):
    i = pl.program_id(0)
    j = pl.program_id(1)
    # z stays fully resident in VMEM (constant index_map); slice aligned row
    # and "column" tiles (pl.multiple_of -> unmasked vector loads).
    a = z_ref[pl.ds(pl.multiple_of(i * tm, tm), tm), :]     # (tm, D)
    b = z_ref[pl.ds(pl.multiple_of(j * tn, tn), tn), :]     # (tn, D)
    # Contract the latent dim on both sides -> (tm, tn); no explicit transpose.
    s = lax.dot_general(a, b, (((1,), (1,)), ((), ())),
                        preferred_element_type=jnp.float32)
    # sigmoid(x) == 0.5*(tanh(x/2) + 1): one EUP transcendental per element.
    o_ref[...] = (0.5 * (jnp.tanh(0.5 * s) + 1.0)).astype(o_ref.dtype)


def inner_product_decode(z, *, tm_cap=512, tn_cap=1024, out_dtype=jnp.float32):
    """adj_recon = sigmoid(z @ z.T).  HBM-write bound on the N x N output;
    pass out_dtype=jnp.bfloat16 to halve the write traffic if the downstream
    loss tolerates bf16 probabilities (kept f32 to match PyTorch numerics).
    TODO(synk): symmetry (computing only j >= i tiles) would halve MXU work and
    writes if the consumer can read the matrix symmetrically."""
    N, D = z.shape
    tm = _pick_tile(N, tm_cap, 8, min_blocks=2)   # >=2 row tiles -> both v7x cores
    tn = _pick_tile(N, tn_cap, 128)               # lane-dense, unmasked stores
    return pl.pallas_call(
        functools.partial(_decoder_kernel, tm=tm, tn=tn),
        out_shape=jax.ShapeDtypeStruct((N, N), out_dtype),
        grid=(N // tm, N // tn),
        in_specs=[pl.BlockSpec((N, D), lambda i, j: (0, 0))],   # z resident
        out_specs=pl.BlockSpec((tm, tn), lambda i, j: (i, j)),
        compiler_params=pltpu.CompilerParams(
            dimension_semantics=("parallel", "parallel"),
            vmem_limit_bytes=_VMEM_LIMIT_BYTES),
    )(z)


# ------------------------------------------------------------------- model ---
def _xavier_uniform(key, shape):
    bound = (6.0 / (shape[0] + shape[1])) ** 0.5
    return jax.random.uniform(key, shape, jnp.float32, -bound, bound)


class GCNModelVAE:
    """JAX/Pallas port of the PyTorch GCNModelVAE forward pass."""

    def __init__(self, input_feat_dim, hidden_dim1=32, hidden_dim2=16,
                 dropout=0.0, *, key):
        k1, k2, k3 = jax.random.split(key, 3)
        self.w1 = _xavier_uniform(k1, (input_feat_dim, hidden_dim1))
        # gc2 / gc3 weights concatenated: one feature pass and ONE adjacency
        # pass produce [mu | logvar] (adj is read one time less).
        self.w23 = jnp.concatenate(
            [_xavier_uniform(k2, (hidden_dim1, hidden_dim2)),
             _xavier_uniform(k3, (hidden_dim1, hidden_dim2))], axis=1)
        self.hidden_dim2 = hidden_dim2
        self.dropout = dropout

    def __call__(self, x, adj, *, key, training=True):
        D = self.hidden_dim2
        N = x.shape[0]
        k1, k2, k3, k_eps, k_dz = jax.random.split(key, 5)
        use_dropout = training and self.dropout > 0.0

        # Cast the (row-normalized 0/1) adjacency to bf16 once: halves the N^2
        # HBM read that dominates both aggregation kernels (f32 accumulation).
        adj_b = adj.astype(jnp.bfloat16)

        # gc1: relu(adj @ (dropout(x) @ W1))
        masks1 = [_dropout_mask(k1, x.shape, self.dropout)] if use_dropout else []
        support1 = feat_matmul(x, masks1, self.w1)              # bf16 (N, H1)
        hidden1 = adj_matmul(adj_b, support1, relu=True)        # f32  (N, H1)

        # gc2 | gc3 fused: [dropout2(h1) @ W2 | dropout3(h1) @ W3]
        if use_dropout:
            masks23 = [_dropout_mask(k2, hidden1.shape, self.dropout),
                       _dropout_mask(k3, hidden1.shape, self.dropout)]
        else:
            masks23 = []
        support23 = feat_matmul(hidden1, masks23, self.w23, split=D)  # bf16 (N, 2D)

        # One adjacency pass produces mu, logvar AND z (reparameterize with
        # std = exp(logvar), matching the reference, + decoder dropout fused
        # as the epilogue).
        eps = jax.random.normal(k_eps, (N, D), jnp.float32) if training else None
        mask_z = _dropout_mask(k_dz, (N, D), self.dropout) if use_dropout else None
        mu, logvar, z = adj_matmul_reparam(adj_b, support23, eps, mask_z, d=D)

        adj_recon = inner_product_decode(z)
        return {"adj_recon": adj_recon, "mu": mu, "logvar": logvar}


if __name__ == "__main__":
    key = jax.random.PRNGKey(0)
    N, F = 256, 64                      # 256 nodes, 64 input features
    k_x, k_adj, k_model, k_fwd = jax.random.split(key, 4)

    x = jax.random.normal(k_x, (N, F), dtype=jnp.float32)
    # Dense stand-in for the (normalized) sparse adjacency used by torch.spmm.
    a = (jax.random.uniform(k_adj, (N, N)) < 0.02).astype(jnp.float32)
    adj = jnp.minimum(a + a.T + jnp.eye(N, dtype=jnp.float32), 1.0)
    adj = adj / jnp.sum(adj, axis=1, keepdims=True)     # simple row normalization

    model = GCNModelVAE(input_feat_dim=F, hidden_dim1=32, hidden_dim2=16,
                        dropout=0.1, key=k_model)

    # Training-mode forward (dropout + reparameterization active).
    out = model(x, adj, key=k_fwd, training=True)
    jax.block_until_ready(out["adj_recon"])
    assert out["adj_recon"].shape == (N, N) and out["adj_recon"].dtype == jnp.float32
    assert out["mu"].shape == (N, 16) and out["logvar"].shape == (N, 16)
    assert bool(jnp.all(jnp.isfinite(out["adj_recon"])))
    assert bool(jnp.all((out["adj_recon"] >= 0.0) & (out["adj_recon"] <= 1.0)))

    # Eval-mode forward is deterministic -> compare with a pure-JAX reference
    # (loose tolerances account for the bf16 adjacency / support activations).
    out_e = model(x, adj, key=k_fwd, training=False)
    jax.block_until_ready(out_e["adj_recon"])
    h1_ref = jnp.maximum(adj @ (x @ model.w1), 0.0)
    ml_ref = adj @ (h1_ref @ model.w23)
    mu_ref, lv_ref = ml_ref[:, :16], ml_ref[:, 16:]
    rec_ref = jax.nn.sigmoid(mu_ref @ mu_ref.T)
    assert bool(jnp.allclose(out_e["mu"], mu_ref, atol=0.1, rtol=0.1))
    assert bool(jnp.allclose(out_e["logvar"], lv_ref, atol=0.1, rtol=0.1))
    assert bool(jnp.allclose(out_e["adj_recon"], rec_ref, atol=0.08, rtol=0.0))

    print("KERNEL_OK")
</pallas_src>

<mosaic_0001>
module attributes {stable_mosaic.version = 11 : i64} {
  func.func @_feat_kernel(%arg0: i32, %arg1: memref<128x64xf32, #tpu.memory_space<vmem>>, %arg2: memref<128x64xf32, #tpu.memory_space<vmem>>, %arg3: memref<64x32xf32, #tpu.memory_space<vmem>>, %arg4: memref<128x32xbf16, #tpu.memory_space<vmem>>) attributes {dimension_semantics = [#tpu.dimension_semantics<parallel>], iteration_bounds = array<i64: 2>, scalar_prefetch = 0 : i64, scratch_operands = 0 : i64, tpu.core_type = #tpu.core_type<tc>, window_params = [{transform_indices = @transform_0, window_bounds = array<i64: 128, 64>}, {transform_indices = @transform_1, window_bounds = array<i64: 128, 64>}, {pipeline_mode = #tpu.pipeline_mode<synchronous>, transform_indices = @transform_2, window_bounds = array<i64: 64, 32>}, {transform_indices = @transform_3, window_bounds = array<i64: 128, 32>}]} {
    %c0 = arith.constant 0 : index
    %c0_0 = arith.constant 0 : index
    %0 = vector.load %arg1[%c0, %c0_0] : memref<128x64xf32, #tpu.memory_space<vmem>>, vector<128x64xf32>
    %c0_1 = arith.constant 0 : index
    %c0_2 = arith.constant 0 : index
    %1 = vector.load %arg2[%c0_1, %c0_2] : memref<128x64xf32, #tpu.memory_space<vmem>>, vector<128x64xf32>
    %2 = arith.mulf %0, %1 : vector<128x64xf32>
    %c0_3 = arith.constant 0 : index
    %c0_4 = arith.constant 0 : index
    %3 = vector.load %arg3[%c0_3, %c0_4] : memref<64x32xf32, #tpu.memory_space<vmem>>, vector<64x32xf32>
    %cst = arith.constant dense<0.000000e+00> : vector<128x32xf32>
    %4 = tpu.matmul %2, %3, %cst {dimension_numbers = #tpu.dot_dimension_numbers<[1], [0], [0], [1], [0, 0, 1, 1], [], []>} : vector<128x64xf32>, vector<64x32xf32>, vector<128x32xf32> -> vector<128x32xf32>
    %5 = arith.truncf %4 : vector<128x32xf32> to vector<128x32xbf16>
    %c0_5 = arith.constant 0 : index
    %c0_6 = arith.constant 0 : index
    %6 = vector.load %arg4[%c0_5, %c0_6] : memref<128x32xbf16, #tpu.memory_space<vmem>>, vector<128x32xbf16>
    tpu.vector_store %arg4[%c0_5, %c0_6], %5 {strides = array<i32>} : memref<128x32xbf16, #tpu.memory_space<vmem>>, vector<128x32xbf16>,
    return
  }
  func.func @transform_0(%arg0: i32) -> (i32, i32) {
    %c0_i32 = arith.constant 0 : i32
    %c0_i32_0 = arith.constant 0 : i32
    return %arg0, %c0_i32 : i32, i32
  }
  func.func @transform_1(%arg0: i32) -> (i32, i32) {
    %c0_i32 = arith.constant 0 : i32
    %c0_i32_0 = arith.constant 0 : i32
    return %arg0, %c0_i32 : i32, i32
  }
  func.func @transform_2(%arg0: i32) -> (i32, i32) {
    %c0_i32 = arith.constant 0 : i32
    %c0_i32_0 = arith.constant 0 : i32
    %c0_i32_1 = arith.constant 0 : i32
    return %c0_i32, %c0_i32_0 : i32, i32
  }
  func.func @transform_3(%arg0: i32) -> (i32, i32) {
    %c0_i32 = arith.constant 0 : i32
    %c0_i32_0 = arith.constant 0 : i32
    return %arg0, %c0_i32 : i32, i32
  }
}

</mosaic_0001>

<llo_original>
// kernel: tpu_custom_call.1
$region0: #{tpu_custom_call.1}
  #allocation0 [shape = 'u32[]', space=smem, size = 0x4, offset = 0x4, fixed_abs, tag = 'smem constant byte address 0x4 - core index']
  #allocation1 [shape = 'u32[72,128]{1,0:T(1,128)}', space=vmem, size = 0x9000, scoped, tag = 'internal scratch']
  %s0 = inlined_call_operand.vmem [shape: f32[256,64], index: 0, kind: input, shape index: {}]
  %s1 = inlined_call_operand.vmem [shape: f32[256,64], index: 1, kind: input, shape index: {}]
  %s2 = inlined_call_operand.vmem [shape: f32[64,32], index: 2, kind: input, shape index: {}]
  %s3 = inlined_call_operand.vmem [shape: bf16[256,32], index: 3, kind: output, shape index: {}]
  %s4 = sld [smem:[#allocation0]]
  $region45: #{tpu_custom_call.1} parent=0
    _
  %s6 = ssub.s32 1, %s4
  %s7 = scalar_select 0, %s6, %s4
  loop: start=0, step=1, limit=4
  $region2: #{tpu_custom_call.1} parent=0 // loop_pre_header
    _
  $region3: #{tpu_custom_call.1} parent=0 // loop_header
    %s9 = sphi 0, %s13
    %p10 = scmp.ge.s32.totalorder %s9, 4
    %s19 = sphi 0, %s21
    %s22 = sphi 0, %s19
    %s23 = sphi 0, %s22
    %s39 = sphi 0, %s23
    %s45 = sphi 0, %s47
    %s48 = sphi 0, %s45
    %s49 = sphi 0, %s48
    %s65 = sphi 0, %s49
    %s69 = sphi 0, %s69
    %s71 = sphi 0, %s69
    %s72 = sphi 0, %s71
    %s86 = sphi 0, %s72
    %s92 = sphi 0, %s94
    %s95 = sphi 0, %s92
    %s96 = sphi 0, %s95
    %s112 = sphi 0, %s96
  $region4: #{tpu_custom_call.1} parent=0 // loop_header_branch
    %12 = sbr.rel (%p10) target = $region8
  $region5: #{tpu_custom_call.1} parent=0 // loop_body
    %s14 = ssub.s32 %s9, 1
    %s15 = ssub.s32 %s9, 2
    %s16 = sadd.s32 %s9, 1
    %s17 = ssub.s32 %s9, %s16
    %p18 = scmp.eq.s32.totalorder %s17, 0
    %s20 = sadd.s32 %s19, 1
    %s21 = scalar_select %p18, %s19, %s20
    %p24 = pneg %p18
    %p25 = scmp.eq.s32.totalorder %s9, 1
    %p26 = por %p24, %p25
    %p27 = scmp.ne.s32.totalorder %s19, %s22
    %p28 = scmp.eq.s32.totalorder %s9, 0
    %p29 = por %p27, %p28
    %p30 = scmp.ne.s32.totalorder %s19, %s22
    %p31 = scmp.eq.s32.totalorder %s14, 1
    %p32 = por %p30, %p31
    %p33 = scmp.ne.s32.totalorder %s22, %s23
    %p34 = scmp.eq.s32.totalorder %s14, 0
    %p35 = por %p33, %p34
    %p36 = scmp.ne.s32.totalorder %s22, %s23
    %p37 = scmp.eq.s32.totalorder %s15, 1
    %p38 = por %p36, %p37
    %p40 = scmp.ne.s32.totalorder %s23, %s39
    %p41 = scmp.eq.s32.totalorder %s15, 0
    %p42 = por %p40, %p41
    %s43 = ssub.s32 %s9, %s16
    %p44 = scmp.eq.s32.totalorder %s43, 0
    %s46 = sadd.s32 %s45, 1
    %s47 = scalar_select %p44, %s45, %s46
    %p50 = pneg %p44
    %p51 = scmp.eq.s32.totalorder %s9, 1
    %p52 = por %p50, %p51
    %p53 = scmp.ne.s32.totalorder %s45, %s48
    %p54 = scmp.eq.s32.totalorder %s9, 0
    %p55 = por %p53, %p54
    %p56 = scmp.ne.s32.totalorder %s45, %s48
    %p57 = scmp.eq.s32.totalorder %s14, 1
    %p58 = por %p56, %p57
    %p59 = scmp.ne.s32.totalorder %s48, %s49
    %p60 = scmp.eq.s32.totalorder %s14, 0
    %p61 = por %p59, %p60
    %p62 = scmp.ne.s32.totalorder %s48, %s49
    %p63 = scmp.eq.s32.totalorder %s15, 1
    %p64 = por %p62, %p63
    %p66 = scmp.ne.s32.totalorder %s49, %s65
    %p67 = scmp.eq.s32.totalorder %s15, 0
    %p68 = por %p66, %p67
    %s70 = sadd.s32 %s69, 1
    %p73 = scmp.eq.s32.totalorder %s9, 1
    %p74 = scmp.ne.s32.totalorder %s69, %s71
    %p75 = scmp.eq.s32.totalorder %s9, 0
    %p76 = por %p74, %p75
    %p77 = scmp.ne.s32.totalorder %s69, %s71
    %p78 = scmp.eq.s32.totalorder %s14, 1
    %p79 = por %p77, %p78
    %p80 = scmp.ne.s32.totalorder %s71, %s72
    %p81 = scmp.eq.s32.totalorder %s14, 0
    %p82 = por %p80, %p81
    %p83 = scmp.ne.s32.totalorder %s71, %s72
    %p84 = scmp.eq.s32.totalorder %s15, 1
    %p85 = por %p83, %p84
    %p87 = scmp.ne.s32.totalorder %s72, %s86
    %p88 = scmp.eq.s32.totalorder %s15, 0
    %p89 = por %p87, %p88
    %s90 = ssub.s32 %s9, %s16
    %p91 = scmp.eq.s32.totalorder %s90, 0
    %s93 = sadd.s32 %s92, 1
    %s94 = scalar_select %p91, %s92, %s93
    %p97 = pneg %p91
    %p98 = scmp.eq.s32.totalorder %s9, 1
    %p99 = por %p97, %p98
    %p100 = scmp.ne.s32.totalorder %s92, %s95
    %p101 = scmp.eq.s32.totalorder %s9, 0
    %p102 = por %p100, %p101
    %p103 = scmp.ne.s32.totalorder %s92, %s95
    %p104 = scmp.eq.s32.totalorder %s14, 1
    %p105 = por %p103, %p104
    %p106 = scmp.ne.s32.totalorder %s95, %s96
    %p107 = scmp.eq.s32.totalorder %s14, 0
    %p108 = por %p106, %p107
    %p109 = scmp.ne.s32.totalorder %s95, %s96
    %p110 = scmp.eq.s32.totalorder %s15, 1
    %p111 = por %p109, %p110
    %p113 = scmp.ne.s32.totalorder %s96, %s112
    %p114 = scmp.eq.s32.totalorder %s15, 0
    %p115 = por %p113, %p114
    %p116 = scmp.le.s32.totalorder 1, %s9
    %p117 = scmp.lt.s32.totalorder %s9, 3
    %p118 = pnand %p116, %p117
    %p119 = pneg %p118
    // Predicated region
    $region9: #{tpu_custom_call.1} parent=5 // pred_check
      _
    $region10: #{tpu_custom_call.1} parent=5 // pred_check_branch
      %121 = sbr.rel (%p118) target = $region12
    $region11: #{tpu_custom_call.1} parent=5 // pred_region
      %s122 = ssub.s32 %s9, 1
      // Predicated region
      $region13: #{tpu_custom_call.1} parent=11 // pred_check
        %p123 = pneg %p82
      $region14: #{tpu_custom_call.1} parent=11 // pred_check_branch
        %125 = sbr.rel (%p123) target = $region16
      $region15: #{tpu_custom_call.1} parent=11 // pred_region
        _
      $region16: #{tpu_custom_call.1} parent=11 // pred_fallthru
        _
    $region12: #{tpu_custom_call.1} parent=5 // pred_fallthru
      _
    %p126 = scmp.lt.s32.totalorder %s9, 2
    // Predicated region
    $region17: #{tpu_custom_call.1} parent=5 // pred_check
      %p127 = pneg %p126
    $region18: #{tpu_custom_call.1} parent=5 // pred_check_branch
      %129 = sbr.rel (%p127) target = $region20
    $region19: #{tpu_custom_call.1} parent=5 // pred_region
      // Predicated region
      $region21: #{tpu_custom_call.1} parent=19 // pred_check
        %p130 = pneg %p29
      $region22: #{tpu_custom_call.1} parent=19 // pred_check_branch
        %132 = sbr.rel (%p130) target = $region24
      $region23: #{tpu_custom_call.1} parent=19 // pred_region
        %s133 = smul.u32 16, %s9
        %p134 = scmp.lt.s32.totalorder %s133, 31
        %s135 = scalar_select %p134, %s133, 31
        %s136 = smul.addr %s135, 8
        %s137 = scalar_lea.vmem %s0, %s136
        %s138 = smul.u32 16, %s9
      $region24: #{tpu_custom_call.1} parent=19 // pred_fallthru
        _
      // Predicated region
      $region25: #{tpu_custom_call.1} parent=19 // pred_check
        %p139 = pneg %p55
      $region26: #{tpu_custom_call.1} parent=19 // pred_check_branch
        %141 = sbr.rel (%p139) target = $region28
      $region27: #{tpu_custom_call.1} parent=19 // pred_region
        %s142 = smul.u32 16, %s9
        %p143 = scmp.lt.s32.totalorder %s142, 31
        %s144 = scalar_select %p143, %s142, 31
        %s145 = smul.addr %s144, 8
        %s146 = scalar_lea.vmem %s1, %s145
        %s147 = smul.u32 16, %s9
      $region28: #{tpu_custom_call.1} parent=19 // pred_fallthru
        _
    $region20: #{tpu_custom_call.1} parent=5 // pred_fallthru
      _
    %p148 = scmp.le.s32.totalorder 1, %s9
    %p149 = scmp.lt.s32.totalorder %s9, 3
    %p150 = pnand %p148, %p149
    %p151 = pneg %p150
    // Predicated region
    $region29: #{tpu_custom_call.1} parent=5 // pred_check
      _
    $region30: #{tpu_custom_call.1} parent=5 // pred_check_branch
      %153 = sbr.rel (%p150) target = $region32
    $region31: #{tpu_custom_call.1} parent=5 // pred_region
      %s154 = ssub.s32 %s9, 1
      %s155 = smul.u32 16, %s14
      %p156 = scmp.lt.s32.totalorder %s155, 31
      %s157 = scalar_select %p156, %s155, 31
      %s158 = smul.addr %s157, 8
      %s159 = scalar_lea.vmem %s0, %s158
      %p160 = pneg %p35
      %p161 = pneg %p32
      %s162 = smul.u32 16, %s14
      %p163 = scmp.lt.s32.totalorder %s162, 31
      %s164 = scalar_select %p163, %s162, 31
      %s165 = smul.addr %s164, 8
      %s166 = scalar_lea.vmem %s1, %s165
      %p167 = pneg %p61
      %p168 = pneg %p58
      %p169 = pneg %p82
      %p170 = pneg %p79
      %p171 = pneg %p108
      %p172 = pneg %p105
      %s173 = smul.u32 16, %s14
      %p174 = scmp.lt.s32.totalorder %s173, 31
      %s175 = scalar_select %p174, %s173, 31
      %s176 = smul.addr %s175, 4
      %s177 = scalar_lea.vmem %s3, %s176
      %s178 = smul.u32 16, %s14
      %p179 = scmp.lt.s32.totalorder %s178, 31
      %s180 = scalar_select %p179, %s178, 31
      %s181 = smul.addr %s180, 8
      %s182 = scalar_lea.vmem %s0, %s181
      %s183 = smul.u32 16, %s14
      %s184 = smul.u32 16, %s14
      %p185 = scmp.lt.s32.totalorder %s184, 31
      %s186 = scalar_select %p185, %s184, 31
      %s187 = smul.addr %s186, 8
      %s188 = scalar_lea.vmem %s1, %s187
      %s189 = smul.u32 16, %s14
      %s190 = smul.u32 16, %s14
      %p191 = scmp.lt.s32.totalorder %s190, 31
      %s192 = scalar_select %p191, %s190, 31
      %s193 = smul.addr %s192, 4
      %s194 = scalar_lea.vmem %s3, %s193
      %s195 = smul.u32 16, %s14
      %v196 = vld [vmem:[%s182] sm:$0xff]
      %v197 = vld [vmem:[%s182 + $0x8] sm:$0xff]
      %v198 = vld [vmem:[%s182 + $0x10] sm:$0xff]
      %v199 = vld [vmem:[%s182 + $0x18] sm:$0xff]
      %v200 = vld [vmem:[%s182 + $0x20] sm:$0xff]
      %v201 = vld [vmem:[%s182 + $0x28] sm:$0xff]
      %v202 = vld [vmem:[%s182 + $0x30] sm:$0xff]
      %v203 = vld [vmem:[%s182 + $0x38] sm:$0xff]
      %v204 = vld [vmem:[%s182 + $0x40] sm:$0xff]
      %v205 = vld [vmem:[%s182 + $0x48] sm:$0xff]
      %v206 = vld [vmem:[%s182 + $0x50] sm:$0xff]
      %v207 = vld [vmem:[%s182 + $0x58] sm:$0xff]
      %v208 = vld [vmem:[%s182 + $0x60] sm:$0xff]
      %v209 = vld [vmem:[%s182 + $0x68] sm:$0xff]
      %v210 = vld [vmem:[%s182 + $0x70] sm:$0xff]
      %v211 = vld [vmem:[%s182 + $0x78] sm:$0xff]
      %v212 = vld [vmem:[%s188] sm:$0xff]
      %v213 = vld [vmem:[%s188 + $0x8] sm:$0xff]
      %v214 = vld [vmem:[%s188 + $0x10] sm:$0xff]
      %v215 = vld [vmem:[%s188 + $0x18] sm:$0xff]
      %v216 = vld [vmem:[%s188 + $0x20] sm:$0xff]
      %v217 = vld [vmem:[%s188 + $0x28] sm:$0xff]
      %v218 = vld [vmem:[%s188 + $0x30] sm:$0xff]
      %v219 = vld [vmem:[%s188 + $0x38] sm:$0xff]
      %v220 = vld [vmem:[%s188 + $0x40] sm:$0xff]
      %v221 = vld [vmem:[%s188 + $0x48] sm:$0xff]
      %v222 = vld [vmem:[%s188 + $0x50] sm:$0xff]
      %v223 = vld [vmem:[%s188 + $0x58] sm:$0xff]
      %v224 = vld [vmem:[%s188 + $0x60] sm:$0xff]
      %v225 = vld [vmem:[%s188 + $0x68] sm:$0xff]
      %v226 = vld [vmem:[%s188 + $0x70] sm:$0xff]
      %v227 = vld [vmem:[%s188 + $0x78] sm:$0xff]
      %v228 = vmul.f32 %v196, %v212
      %v229 = vmul.f32 %v197, %v213
      %v230 = vmul.f32 %v198, %v214
      %v231 = vmul.f32 %v199, %v215
      %v232 = vmul.f32 %v200, %v216
      %v233 = vmul.f32 %v201, %v217
      %v234 = vmul.f32 %v202, %v218
      %v235 = vmul.f32 %v203, %v219
      %v236 = vmul.f32 %v204, %v220
      %v237 = vmul.f32 %v205, %v221
      %v238 = vmul.f32 %v206, %v222
      %v239 = vmul.f32 %v207, %v223
      %v240 = vmul.f32 %v208, %v224
      %v241 = vmul.f32 %v209, %v225
      %v242 = vmul.f32 %v210, %v226
      %v243 = vmul.f32 %v211, %v227
      %v244 = vld [vmem:[%s2] sm:$0xff]
      %v245 = vld [vmem:[%s2 + $0x8] sm:$0xff]
      %v246 = vld [vmem:[%s2 + $0x10] sm:$0xff]
      %v247 = vld [vmem:[%s2 + $0x18] sm:$0xff]
      %v248 = vld [vmem:[%s2 + $0x20] sm:$0xff]
      %v249 = vld [vmem:[%s2 + $0x28] sm:$0xff]
      %v250 = vld [vmem:[%s2 + $0x30] sm:$0xff]
      %v251 = vld [vmem:[%s2 + $0x38] sm:$0xff]
      %vm252 = vcmask 523264
      %v254 = vsel %vm252, %v228, 0
      %v257 = vsel %vm252, %v229, 0
      %v260 = vsel %vm252, %v230, 0
      %v263 = vsel %vm252, %v231, 0
      %v266 = vsel %vm252, %v232, 0
      %v269 = vsel %vm252, %v233, 0
      %v272 = vsel %vm252, %v234, 0
      %v275 = vsel %vm252, %v235, 0
      %v278 = vsel %vm252, %v236, 0
      %v281 = vsel %vm252, %v237, 0
      %v284 = vsel %vm252, %v238, 0
      %v287 = vsel %vm252, %v239, 0
      %v290 = vsel %vm252, %v240, 0
      %v293 = vsel %vm252, %v241, 0
      %v296 = vsel %vm252, %v242, 0
      %v299 = vsel %vm252, %v243, 0
      %301 = vmatpush.msra.mxu0 0.0
      %302 = vmatpush.msra.mxu0 0.0
      %303 = vmatpush.msra.mxu0 0.0
      %304 = vmatpush.msra.mxu0 0.0
      %305 = vmatpush.msra.mxu0 0.0
      %306 = vmatpush.msra.mxu0 0.0
      %307 = vmatpush.msra.mxu0 0.0
      %308 = vmatpush.msra.mxu0 0.0
      %309 = vmatpush.msra.mxu0 %v251
      %310 = vmatpush.msra.mxu0 %v250
      %311 = vmatpush.msra.mxu0 %v249
      %312 = vmatpush.msra.mxu0 %v248
      %313 = vmatpush.msra.mxu0 %v247
      %314 = vmatpush.msra.mxu0 %v246
      %315 = vmatpush.msra.mxu0 %v245
      %316 = vmatpush.msra.mxu0 %v244
      %317 = vmatmul.f32.gmra.mxu0 %v254
      %v318 = vpop.f32.mrf.mxu0
      %v319 = vadd.f32 0.0, %v318
      %320 = vmatmul.f32.gmra.mxu0 %v257
      %v321 = vpop.f32.mrf.mxu0
      %v322 = vadd.f32 0.0, %v321
      %323 = vmatmul.f32.gmra.mxu0 %v260
      %v324 = vpop.f32.mrf.mxu0
      %v325 = vadd.f32 0.0, %v324
      %326 = vmatmul.f32.gmra.mxu0 %v263
      %v327 = vpop.f32.mrf.mxu0
      %v328 = vadd.f32 0.0, %v327
      %329 = vmatmul.f32.gmra.mxu0 %v266
      %v330 = vpop.f32.mrf.mxu0
      %v331 = vadd.f32 0.0, %v330
      %332 = vmatmul.f32.gmra.mxu0 %v269
      %v333 = vpop.f32.mrf.mxu0
      %v334 = vadd.f32 0.0, %v333
      %335 = vmatmul.f32.gmra.mxu0 %v272
      %v336 = vpop.f32.mrf.mxu0
      %v337 = vadd.f32 0.0, %v336
      %338 = vmatmul.f32.gmra.mxu0 %v275
      %v339 = vpop.f32.mrf.mxu0
      %v340 = vadd.f32 0.0, %v339
      %341 = vmatmul.f32.gmra.mxu0 %v278
      %v342 = vpop.f32.mrf.mxu0
      %v343 = vadd.f32 0.0, %v342
      %344 = vmatmul.f32.gmra.mxu0 %v281
      %v345 = vpop.f32.mrf.mxu0
      %v346 = vadd.f32 0.0, %v345
      %347 = vmatmul.f32.gmra.mxu0 %v284
      %v348 = vpop.f32.mrf.mxu0
      %v349 = vadd.f32 0.0, %v348
      %350 = vmatmul.f32.gmra.mxu0 %v287
      %v351 = vpop.f32.mrf.mxu0
      %v352 = vadd.f32 0.0, %v351
      %353 = vmatmul.f32.gmra.mxu0 %v290
      %v354 = vpop.f32.mrf.mxu0
      %v355 = vadd.f32 0.0, %v354
      %356 = vmatmul.f32.gmra.mxu0 %v293
      %v357 = vpop.f32.mrf.mxu0
      %v358 = vadd.f32 0.0, %v357
      %359 = vmatmul.f32.gmra.mxu0 %v296
      %v360 = vpop.f32.mrf.mxu0
      %v361 = vadd.f32 0.0, %v360
      %362 = vmatmul.f32.gmra.mxu0 %v299
      %v363 = vpop.f32.mrf.mxu0
      %v364 = vadd.f32 0.0, %v363
      %365 = vdwg.mxu0
      %v366 = vpack.c.bf16 %v319, %v319
      %v367 = vpack.c.bf16 %v322, %v322
      %v368 = vpack.c.bf16 %v325, %v325
      %v369 = vpack.c.bf16 %v328, %v328
      %v370 = vpack.c.bf16 %v331, %v331
      %v371 = vpack.c.bf16 %v334, %v334
      %v372 = vpack.c.bf16 %v337, %v337
      %v373 = vpack.c.bf16 %v340, %v340
      %v374 = vpack.c.bf16 %v343, %v343
      %v375 = vpack.c.bf16 %v346, %v346
      %v376 = vpack.c.bf16 %v349, %v349
      %v377 = vpack.c.bf16 %v352, %v352
      %v378 = vpack.c.bf16 %v355, %v355
      %v379 = vpack.c.bf16 %v358, %v358
      %v380 = vpack.c.bf16 %v361, %v361
      %v381 = vpack.c.bf16 %v364, %v364
      %vm382 = vcmask 257024
      %383 = vst.msk [vmem:[%s194] sm:$0xf] %vm382, %v366
      %384 = vst.msk [vmem:[%s194 + $0x4] sm:$0xf] %vm382, %v367
      %385 = vst.msk [vmem:[%s194 + $0x8] sm:$0xf] %vm382, %v368
      %386 = vst.msk [vmem:[%s194 + $0xc] sm:$0xf] %vm382, %v369
      %387 = vst.msk [vmem:[%s194 + $0x10] sm:$0xf] %vm382, %v370
      %388 = vst.msk [vmem:[%s194 + $0x14] sm:$0xf] %vm382, %v371
      %389 = vst.msk [vmem:[%s194 + $0x18] sm:$0xf] %vm382, %v372
      %390 = vst.msk [vmem:[%s194 + $0x1c] sm:$0xf] %vm382, %v373
      %391 = vst.msk [vmem:[%s194 + $0x20] sm:$0xf] %vm382, %v374
      %392 = vst.msk [vmem:[%s194 + $0x24] sm:$0xf] %vm382, %v375
      %393 = vst.msk [vmem:[%s194 + $0x28] sm:$0xf] %vm382, %v376
      %394 = vst.msk [vmem:[%s194 + $0x2c] sm:$0xf] %vm382, %v377
      %395 = vst.msk [vmem:[%s194 + $0x30] sm:$0xf] %vm382, %v378
      %396 = vst.msk [vmem:[%s194 + $0x34] sm:$0xf] %vm382, %v379
      %397 = vst.msk [vmem:[%s194 + $0x38] sm:$0xf] %vm382, %v380
      %398 = vst.msk [vmem:[%s194 + $0x3c] sm:$0xf] %vm382, %v381
      %s399 = smul.u32 16, %s14
      %p400 = scmp.lt.s32.totalorder %s399, 31
      %s401 = scalar_select %p400, %s399, 31
      %s402 = smul.addr %s401, 4
      %s403 = scalar_lea.vmem %s3, %s402
      // Predicated region
      $region33: #{tpu_custom_call.1} parent=31 // pred_check
        %p404 = pneg %p105
      $region34: #{tpu_custom_call.1} parent=31 // pred_check_branch
        %406 = sbr.rel (%p404) target = $region36
      $region35: #{tpu_custom_call.1} parent=31 // pred_region
        %s407 = smul.u32 16, %s14
      $region36: #{tpu_custom_call.1} parent=31 // pred_fallthru
        _
    $region32: #{tpu_custom_call.1} parent=5 // pred_fallthru
      _
    %p408 = scmp.le.s32.totalorder 2, %s9
    // Predicated region
    $region37: #{tpu_custom_call.1} parent=5 // pred_check
      %p409 = pneg %p408
    $region38: #{tpu_custom_call.1} parent=5 // pred_check_branch
      %411 = sbr.rel (%p409) target = $region40
    $region39: #{tpu_custom_call.1} parent=5 // pred_region
      %s412 = ssub.s32 %s9, 2
      // Predicated region
      $region41: #{tpu_custom_call.1} parent=39 // pred_check
        %p413 = pneg %p111
      $region42: #{tpu_custom_call.1} parent=39 // pred_check_branch
        %415 = sbr.rel (%p413) target = $region44
      $region43: #{tpu_custom_call.1} parent=39 // pred_region
        %s416 = smul.u32 16, %s15
        %p417 = scmp.lt.s32.totalorder %s416, 31
        %s418 = scalar_select %p417, %s416, 31
        %s419 = smul.addr %s418, 4
        %s420 = scalar_lea.vmem %s3, %s419
      $region44: #{tpu_custom_call.1} parent=39 // pred_fallthru
        _
    $region40: #{tpu_custom_call.1} parent=5 // pred_fallthru
      _
  $region6: #{tpu_custom_call.1} parent=0 // loop_footer
    %s13 = sadd.s32 1, %s9
  $region7: #{tpu_custom_call.1} parent=0 // loop_footer_branch
    %8 = sbr.rel target = $region3
  $region8: #{tpu_custom_call.1} parent=0 // loop_exit
    _

</llo_original>
